<compile_context>
chip_gen: v7x
topology: tpu7x:2x2x1
jax: 0.10.0
libtpu: 0.0.40
codegen_flags: <defaults>
</compile_context>

<pallas_src>
import jax
import jax.numpy as jnp
from jax.experimental import pallas as pl
from jax.experimental.pallas import tpu as pltpu

EPS = 1e-8
DIGITIZE_NUM = 20
VALUE_RANGE = (-1.0, 1.0)


def _make_ccc_kernel(n_samples, digitize_num, lo, step, tile_n):
    d = digitize_num

    def kernel(x_ref, y_ref, out_ref, sx, sy, sxx, syy, sxy):
        pid = pl.program_id(0)
        nblk = pl.num_programs(0)

        @pl.when(pid == 0)
        def _init():
            sx[...] = jnp.zeros_like(sx)
            sy[...] = jnp.zeros_like(sy)
            sxx[...] = jnp.zeros_like(sxx)
            syy[...] = jnp.zeros_like(syy)
            sxy[...] = jnp.zeros_like(sxy)

        x = x_ref[...].astype(jnp.float32)   # (D, TILE_N): samples on lanes
        y = y_ref[...].astype(jnp.float32)   # (1, TILE_N)

        # bin centers along the sublane axis (compile-time linspace, no DMA)
        d_idx = jax.lax.broadcasted_iota(jnp.int32, (d, 1), 0).astype(jnp.float32)
        bins = lo + d_idx * step             # (D, 1)

        # fused softmax-expectation (no (D, N) probability tensor materialized)
        m = jnp.max(x, axis=0, keepdims=True)               # (1, TILE_N)
        e = jnp.exp(x - m)                                   # (D, TILE_N)
        num = jnp.sum(e * bins, axis=0, keepdims=True)       # (1, TILE_N)
        den = jnp.sum(e, axis=0, keepdims=True)              # (1, TILE_N)
        r = pl.reciprocal(den, approx=True)                  # EUP slot
        r = r * (2.0 - den * r)                              # 1 NR step -> ~f32 exact
        xe = num * r                                         # (1, TILE_N)

        # mask out lanes past the true sample count (padding)
        col = jax.lax.broadcasted_iota(jnp.int32, (1, tile_n), 1) + pid * tile_n
        mask = (col < n_samples).astype(jnp.float32)
        xe = xe * mask
        yv = y * mask

        # accumulate lane-vector sufficient statistics (pure VPU adds)
        sx[...] += xe
        sy[...] += yv
        sxx[...] += xe * xe
        syy[...] += yv * yv
        sxy[...] += xe * yv

        @pl.when(pid == nblk - 1)
        def _finalize():
            n = jnp.float32(n_samples)
            sum_x = jnp.sum(sx[...])
            sum_y = jnp.sum(sy[...])
            sum_xx = jnp.sum(sxx[...])
            sum_yy = jnp.sum(syy[...])
            sum_xy = jnp.sum(sxy[...])

            x_mean = sum_x / n
            y_mean = sum_y / n
            # single-pass centered sums; clamp against tiny negative values from
            # f32 cancellation (values here are O(1), so this is benign).
            sum_vx2 = jnp.maximum(sum_xx - n * x_mean * x_mean, 0.0)
            sum_vy2 = jnp.maximum(sum_yy - n * y_mean * y_mean, 0.0)
            sum_vxvy = sum_xy - n * x_mean * y_mean

            rho = sum_vxvy / (jnp.sqrt(sum_vx2) * jnp.sqrt(sum_vy2) + EPS)
            # torch.std uses the unbiased estimator (N - 1)
            x_s = jnp.sqrt(sum_vx2 / (n - 1.0))
            y_s = jnp.sqrt(sum_vy2 / (n - 1.0))
            ccc = (2.0 * rho * x_s * y_s
                   / (x_s * x_s + y_s * y_s + (x_mean - y_mean) ** 2 + EPS))
            out_ref[0, 0] = 1.0 - ccc

    return kernel


def ccc_loss(x, y, digitize_num=DIGITIZE_NUM, value_range=VALUE_RANGE, tile_n=2048):
    """x: (N, digitize_num) logits, y: (N,) targets. Returns scalar loss."""
    n = x.shape[0]
    assert x.shape[-1] == digitize_num
    assert n >= 2, "unbiased std needs at least 2 samples (torch would give NaN)"
    assert tile_n % 128 == 0

    lo, hi = float(value_range[0]), float(value_range[1])
    step = (hi - lo) / float(digitize_num - 1)

    # Lane-dense layout: samples on the lane axis. Keep the caller's dtype
    # (e.g. bf16) through the DMA; the kernel casts to f32 for the math.
    x_t = x.reshape(n, digitize_num).T       # (D, N)
    y_row = y.reshape(1, n)                  # (1, N)

    tile = min(tile_n, max(128, ((n + 127) // 128) * 128))
    n_padded = ((n + tile - 1) // tile) * tile
    n_blocks = n_padded // tile
    if n_padded != n:
        x_t = jnp.pad(x_t, ((0, 0), (0, n_padded - n)))
        y_row = jnp.pad(y_row, ((0, 0), (0, n_padded - n)))

    kernel = _make_ccc_kernel(n, digitize_num, lo, step, tile)

    out = pl.pallas_call(
        kernel,
        out_shape=jax.ShapeDtypeStruct((1, 1), jnp.float32),
        grid_spec=pltpu.PrefetchScalarGridSpec(
            num_scalar_prefetch=0,
            grid=(n_blocks,),
            in_specs=[
                pl.BlockSpec((digitize_num, tile), lambda i: (0, i)),
                pl.BlockSpec((1, tile), lambda i: (0, i)),
            ],
            out_specs=pl.BlockSpec(memory_space=pltpu.MemorySpace.SMEM),
            scratch_shapes=[pltpu.VMEM((1, tile), jnp.float32)] * 5,
        ),
        compiler_params=pltpu.CompilerParams(
            dimension_semantics=("arbitrary",)),
    )(x_t, y_row)
    return out[0, 0]


def _reference(x, y):
    # Pure-JAX reference with the exact same math as the PyTorch module.
    bins = jnp.linspace(VALUE_RANGE[0], VALUE_RANGE[1], DIGITIZE_NUM,
                        dtype=jnp.float32).reshape(1, -1)
    p = jax.nn.softmax(x.astype(jnp.float32), axis=-1)
    xe = jnp.sum(p * bins, axis=-1)
    yv = y.astype(jnp.float32).reshape(-1)
    vx = xe - jnp.mean(xe)
    vy = yv - jnp.mean(yv)
    rho = jnp.sum(vx * vy) / (jnp.sqrt(jnp.sum(vx ** 2)) * jnp.sqrt(jnp.sum(vy ** 2)) + EPS)
    x_s = jnp.std(xe, ddof=1)
    y_s = jnp.std(yv, ddof=1)
    ccc = 2 * rho * x_s * y_s / (x_s ** 2 + y_s ** 2 + (jnp.mean(xe) - jnp.mean(yv)) ** 2 + EPS)
    return 1.0 - ccc


if __name__ == "__main__":
    key = jax.random.PRNGKey(0)
    kx1, ky1, kx2, ky2 = jax.random.split(key, 4)

    # Small case (single grid block).
    N1 = 8
    x1 = jax.random.normal(kx1, (N1, DIGITIZE_NUM), dtype=jnp.float32)
    y1 = jax.random.uniform(ky1, (N1,), dtype=jnp.float32, minval=-1.0, maxval=1.0)
    loss1 = ccc_loss(x1, y1)
    jax.block_until_ready(loss1)
    ref1 = _reference(x1, y1)
    assert jnp.allclose(loss1, ref1, atol=1e-4, rtol=1e-4), (loss1, ref1)

    # Larger case with a forced small tile to exercise the multi-block grid
    # and the sufficient-statistic accumulators (384 padded cols -> 3 blocks).
    N2 = 300
    x2 = jax.random.normal(kx2, (N2, DIGITIZE_NUM), dtype=jnp.float32)
    y2 = jax.random.uniform(ky2, (N2,), dtype=jnp.float32, minval=-1.0, maxval=1.0)
    loss2 = ccc_loss(x2, y2, tile_n=128)
    jax.block_until_ready(loss2)
    ref2 = _reference(x2, y2)
    assert jnp.allclose(loss2, ref2, atol=1e-4, rtol=1e-4), (loss2, ref2)

    print("KERNEL_OK")
</pallas_src>

<mosaic_0001>
module attributes {stable_mosaic.version = 11 : i64} {
  func.func @kernel(%arg0: i32, %arg1: memref<20x128xf32, #tpu.memory_space<vmem>>, %arg2: memref<1x128xf32, #tpu.memory_space<vmem>>, %arg3: memref<1x1xf32, #tpu.memory_space<smem>>, %arg4: memref<1x128xf32, #tpu.memory_space<vmem>>, %arg5: memref<1x128xf32, #tpu.memory_space<vmem>>, %arg6: memref<1x128xf32, #tpu.memory_space<vmem>>, %arg7: memref<1x128xf32, #tpu.memory_space<vmem>>, %arg8: memref<1x128xf32, #tpu.memory_space<vmem>>) attributes {dimension_semantics = [#tpu.dimension_semantics<arbitrary>], iteration_bounds = array<i64: 1>, scalar_prefetch = 0 : i64, scratch_operands = 5 : i64, tpu.core_type = #tpu.core_type<tc>, window_params = [{transform_indices = @transform_0, window_bounds = array<i64: 20, 128>}, {transform_indices = @transform_1, window_bounds = array<i64: 1, 128>}, {transform_indices = @transform_2, window_bounds = array<i64: 1, 1>}]} {
    %c0_i32 = arith.constant 0 : i32
    %0 = arith.cmpi eq, %arg0, %c0_i32 : i32
    %1 = arith.extui %0 : i1 to i32
    %c0_i32_0 = arith.constant 0 : i32
    %2 = arith.cmpi ne, %1, %c0_i32_0 : i32
    scf.if %2 {
      %cst_31 = arith.constant 0.000000e+00 : f32
      %59 = vector.broadcast %cst_31 : f32 to vector<1x128xf32>
      %c0_32 = arith.constant 0 : index
      %c0_33 = arith.constant 0 : index
      %60 = vector.load %arg4[%c0_32, %c0_33] : memref<1x128xf32, #tpu.memory_space<vmem>>, vector<1x128xf32>
      tpu.vector_store %arg4[%c0_32, %c0_33], %59 {strides = array<i32>} : memref<1x128xf32, #tpu.memory_space<vmem>>, vector<1x128xf32>,
      %cst_34 = arith.constant 0.000000e+00 : f32
      %61 = vector.broadcast %cst_34 : f32 to vector<1x128xf32>
      %c0_35 = arith.constant 0 : index
      %c0_36 = arith.constant 0 : index
      %62 = vector.load %arg5[%c0_35, %c0_36] : memref<1x128xf32, #tpu.memory_space<vmem>>, vector<1x128xf32>
      tpu.vector_store %arg5[%c0_35, %c0_36], %61 {strides = array<i32>} : memref<1x128xf32, #tpu.memory_space<vmem>>, vector<1x128xf32>,
      %cst_37 = arith.constant 0.000000e+00 : f32
      %63 = vector.broadcast %cst_37 : f32 to vector<1x128xf32>
      %c0_38 = arith.constant 0 : index
      %c0_39 = arith.constant 0 : index
      %64 = vector.load %arg6[%c0_38, %c0_39] : memref<1x128xf32, #tpu.memory_space<vmem>>, vector<1x128xf32>
      tpu.vector_store %arg6[%c0_38, %c0_39], %63 {strides = array<i32>} : memref<1x128xf32, #tpu.memory_space<vmem>>, vector<1x128xf32>,
      %cst_40 = arith.constant 0.000000e+00 : f32
      %65 = vector.broadcast %cst_40 : f32 to vector<1x128xf32>
      %c0_41 = arith.constant 0 : index
      %c0_42 = arith.constant 0 : index
      %66 = vector.load %arg7[%c0_41, %c0_42] : memref<1x128xf32, #tpu.memory_space<vmem>>, vector<1x128xf32>
      tpu.vector_store %arg7[%c0_41, %c0_42], %65 {strides = array<i32>} : memref<1x128xf32, #tpu.memory_space<vmem>>, vector<1x128xf32>,
      %cst_43 = arith.constant 0.000000e+00 : f32
      %67 = vector.broadcast %cst_43 : f32 to vector<1x128xf32>
      %c0_44 = arith.constant 0 : index
      %c0_45 = arith.constant 0 : index
      %68 = vector.load %arg8[%c0_44, %c0_45] : memref<1x128xf32, #tpu.memory_space<vmem>>, vector<1x128xf32>
      tpu.vector_store %arg8[%c0_44, %c0_45], %67 {strides = array<i32>} : memref<1x128xf32, #tpu.memory_space<vmem>>, vector<1x128xf32>,
    } else {
    }
    %c0 = arith.constant 0 : index
    %c0_1 = arith.constant 0 : index
    %3 = vector.load %arg1[%c0, %c0_1] : memref<20x128xf32, #tpu.memory_space<vmem>>, vector<20x128xf32>
    %c0_2 = arith.constant 0 : index
    %c0_3 = arith.constant 0 : index
    %4 = vector.load %arg2[%c0_2, %c0_3] : memref<1x128xf32, #tpu.memory_space<vmem>>, vector<1x128xf32>
    %5 = tpu.iota {dimensions = array<i32: 0>} : vector<20x1xi32>
    %6 = arith.sitofp %5 : vector<20x1xi32> to vector<20x1xf32>
    %cst = arith.constant 0.105263159 : f32
    %7 = vector.broadcast %cst : f32 to vector<20x1xf32>
    %8 = arith.mulf %6, %7 : vector<20x1xf32>
    %cst_4 = arith.constant -1.000000e+00 : f32
    %9 = vector.broadcast %cst_4 : f32 to vector<20x1xf32>
    %10 = arith.addf %9, %8 : vector<20x1xf32>
    %cst_5 = arith.constant dense<0xFF800000> : vector<128xf32>
    %11 = vector.multi_reduction <maximumf>, %3, %cst_5 [0] : vector<20x128xf32> to vector<128xf32>
    %12 = vector.shape_cast %11 : vector<128xf32> to vector<1x128xf32>
    %13 = vector.broadcast %12 : vector<1x128xf32> to vector<20x128xf32>
    %14 = arith.subf %3, %13 : vector<20x128xf32>
    %15 = math.exp %14 : vector<20x128xf32>
    %16 = vector.broadcast %10 : vector<20x1xf32> to vector<20x128xf32>
    %17 = arith.mulf %15, %16 : vector<20x128xf32>
    %cst_6 = arith.constant dense<0.000000e+00> : vector<128xf32>
    %18 = vector.multi_reduction <add>, %17, %cst_6 [0] : vector<20x128xf32> to vector<128xf32>
    %19 = vector.shape_cast %18 : vector<128xf32> to vector<1x128xf32>
    %cst_7 = arith.constant dense<0.000000e+00> : vector<128xf32>
    %20 = vector.multi_reduction <add>, %15, %cst_7 [0] : vector<20x128xf32> to vector<128xf32>
    %21 = vector.shape_cast %20 : vector<128xf32> to vector<1x128xf32>
    %22 = tpu.reciprocal %21 {approx = true} : vector<1x128xf32> -> vector<1x128xf32>
    %23 = arith.mulf %21, %22 : vector<1x128xf32>
    %cst_8 = arith.constant 2.000000e+00 : f32
    %24 = vector.broadcast %cst_8 : f32 to vector<1x128xf32>
    %25 = arith.subf %24, %23 : vector<1x128xf32>
    %26 = arith.mulf %22, %25 : vector<1x128xf32>
    %27 = arith.mulf %19, %26 : vector<1x128xf32>
    %28 = tpu.iota {dimensions = array<i32: 1>} : vector<1x128xi32>
    %c128_i32 = arith.constant 128 : i32
    %29 = arith.muli %arg0, %c128_i32 : i32
    %30 = vector.broadcast %29 : i32 to vector<1x128xi32>
    %31 = arith.addi %28, %30 : vector<1x128xi32>
    %c8_i32 = arith.constant 8 : i32
    %32 = vector.broadcast %c8_i32 : i32 to vector<1x128xi32>
    %33 = arith.cmpi slt, %31, %32 : vector<1x128xi32>
    %34 = arith.extui %33 : vector<1x128xi1> to vector<1x128xi32>
    %35 = arith.sitofp %34 : vector<1x128xi32> to vector<1x128xf32>
    %36 = arith.mulf %27, %35 : vector<1x128xf32>
    %37 = arith.mulf %4, %35 : vector<1x128xf32>
    %c0_9 = arith.constant 0 : index
    %c0_10 = arith.constant 0 : index
    %38 = vector.load %arg4[%c0_9, %c0_10] : memref<1x128xf32, #tpu.memory_space<vmem>>, vector<1x128xf32>
    %39 = arith.addf %38, %36 : vector<1x128xf32>
    %c0_11 = arith.constant 0 : index
    %c0_12 = arith.constant 0 : index
    %40 = vector.load %arg4[%c0_11, %c0_12] : memref<1x128xf32, #tpu.memory_space<vmem>>, vector<1x128xf32>
    tpu.vector_store %arg4[%c0_11, %c0_12], %39 {strides = array<i32>} : memref<1x128xf32, #tpu.memory_space<vmem>>, vector<1x128xf32>,
    %c0_13 = arith.constant 0 : index
    %c0_14 = arith.constant 0 : index
    %41 = vector.load %arg5[%c0_13, %c0_14] : memref<1x128xf32, #tpu.memory_space<vmem>>, vector<1x128xf32>
    %42 = arith.addf %41, %37 : vector<1x128xf32>
    %c0_15 = arith.constant 0 : index
    %c0_16 = arith.constant 0 : index
    %43 = vector.load %arg5[%c0_15, %c0_16] : memref<1x128xf32, #tpu.memory_space<vmem>>, vector<1x128xf32>
    tpu.vector_store %arg5[%c0_15, %c0_16], %42 {strides = array<i32>} : memref<1x128xf32, #tpu.memory_space<vmem>>, vector<1x128xf32>,
    %c0_17 = arith.constant 0 : index
    %c0_18 = arith.constant 0 : index
    %44 = vector.load %arg6[%c0_17, %c0_18] : memref<1x128xf32, #tpu.memory_space<vmem>>, vector<1x128xf32>
    %45 = arith.mulf %36, %36 : vector<1x128xf32>
    %46 = arith.addf %44, %45 : vector<1x128xf32>
    %c0_19 = arith.constant 0 : index
    %c0_20 = arith.constant 0 : index
    %47 = vector.load %arg6[%c0_19, %c0_20] : memref<1x128xf32, #tpu.memory_space<vmem>>, vector<1x128xf32>
    tpu.vector_store %arg6[%c0_19, %c0_20], %46 {strides = array<i32>} : memref<1x128xf32, #tpu.memory_space<vmem>>, vector<1x128xf32>,
    %c0_21 = arith.constant 0 : index
    %c0_22 = arith.constant 0 : index
    %48 = vector.load %arg7[%c0_21, %c0_22] : memref<1x128xf32, #tpu.memory_space<vmem>>, vector<1x128xf32>
    %49 = arith.mulf %37, %37 : vector<1x128xf32>
    %50 = arith.addf %48, %49 : vector<1x128xf32>
    %c0_23 = arith.constant 0 : index
    %c0_24 = arith.constant 0 : index
    %51 = vector.load %arg7[%c0_23, %c0_24] : memref<1x128xf32, #tpu.memory_space<vmem>>, vector<1x128xf32>
    tpu.vector_store %arg7[%c0_23, %c0_24], %50 {strides = array<i32>} : memref<1x128xf32, #tpu.memory_space<vmem>>, vector<1x128xf32>,
    %c0_25 = arith.constant 0 : index
    %c0_26 = arith.constant 0 : index
    %52 = vector.load %arg8[%c0_25, %c0_26] : memref<1x128xf32, #tpu.memory_space<vmem>>, vector<1x128xf32>
    %53 = arith.mulf %36, %37 : vector<1x128xf32>
    %54 = arith.addf %52, %53 : vector<1x128xf32>
    %c0_27 = arith.constant 0 : index
    %c0_28 = arith.constant 0 : index
    %55 = vector.load %arg8[%c0_27, %c0_28] : memref<1x128xf32, #tpu.memory_space<vmem>>, vector<1x128xf32>
    tpu.vector_store %arg8[%c0_27, %c0_28], %54 {strides = array<i32>} : memref<1x128xf32, #tpu.memory_space<vmem>>, vector<1x128xf32>,
    %c0_i32_29 = arith.constant 0 : i32
    %56 = arith.cmpi eq, %arg0, %c0_i32_29 : i32
    %57 = arith.extui %56 : i1 to i32
    %c0_i32_30 = arith.constant 0 : i32
    %58 = arith.cmpi ne, %57, %c0_i32_30 : i32
    scf.if %58 {
      %c0_31 = arith.constant 0 : index
      %c0_32 = arith.constant 0 : index
      %59 = vector.load %arg4[%c0_31, %c0_32] : memref<1x128xf32, #tpu.memory_space<vmem>>, vector<1x128xf32>
      %60 = vector.shape_cast %59 : vector<1x128xf32> to vector<1x1x128xf32>
      %cst_33 = arith.constant dense<0.000000e+00> : vector<1xf32>
      %61 = vector.multi_reduction <add>, %60, %cst_33 [1, 2] : vector<1x1x128xf32> to vector<1xf32>
      %62 = vector.shape_cast %61 : vector<1xf32> to vector<1x1x1xf32>
      %63 = vector.extract %62[0, 0, 0] : f32 from vector<1x1x1xf32>
      %c0_34 = arith.constant 0 : index
      %c0_35 = arith.constant 0 : index
      %64 = vector.load %arg5[%c0_34, %c0_35] : memref<1x128xf32, #tpu.memory_space<vmem>>, vector<1x128xf32>
      %65 = vector.shape_cast %64 : vector<1x128xf32> to vector<1x1x128xf32>
      %cst_36 = arith.constant dense<0.000000e+00> : vector<1xf32>
      %66 = vector.multi_reduction <add>, %65, %cst_36 [1, 2] : vector<1x1x128xf32> to vector<1xf32>
      %67 = vector.shape_cast %66 : vector<1xf32> to vector<1x1x1xf32>
      %68 = vector.extract %67[0, 0, 0] : f32 from vector<1x1x1xf32>
      %c0_37 = arith.constant 0 : index
      %c0_38 = arith.constant 0 : index
      %69 = vector.load %arg6[%c0_37, %c0_38] : memref<1x128xf32, #tpu.memory_space<vmem>>, vector<1x128xf32>
      %70 = vector.shape_cast %69 : vector<1x128xf32> to vector<1x1x128xf32>
      %cst_39 = arith.constant dense<0.000000e+00> : vector<1xf32>
      %71 = vector.multi_reduction <add>, %70, %cst_39 [1, 2] : vector<1x1x128xf32> to vector<1xf32>
      %72 = vector.shape_cast %71 : vector<1xf32> to vector<1x1x1xf32>
      %73 = vector.extract %72[0, 0, 0] : f32 from vector<1x1x1xf32>
      %c0_40 = arith.constant 0 : index
      %c0_41 = arith.constant 0 : index
      %74 = vector.load %arg7[%c0_40, %c0_41] : memref<1x128xf32, #tpu.memory_space<vmem>>, vector<1x128xf32>
      %75 = vector.shape_cast %74 : vector<1x128xf32> to vector<1x1x128xf32>
      %cst_42 = arith.constant dense<0.000000e+00> : vector<1xf32>
      %76 = vector.multi_reduction <add>, %75, %cst_42 [1, 2] : vector<1x1x128xf32> to vector<1xf32>
      %77 = vector.shape_cast %76 : vector<1xf32> to vector<1x1x1xf32>
      %78 = vector.extract %77[0, 0, 0] : f32 from vector<1x1x1xf32>
      %c0_43 = arith.constant 0 : index
      %c0_44 = arith.constant 0 : index
      %79 = vector.load %arg8[%c0_43, %c0_44] : memref<1x128xf32, #tpu.memory_space<vmem>>, vector<1x128xf32>
      %80 = vector.shape_cast %79 : vector<1x128xf32> to vector<1x1x128xf32>
      %cst_45 = arith.constant dense<0.000000e+00> : vector<1xf32>
      %81 = vector.multi_reduction <add>, %80, %cst_45 [1, 2] : vector<1x1x128xf32> to vector<1xf32>
      %82 = vector.shape_cast %81 : vector<1xf32> to vector<1x1x1xf32>
      %83 = vector.extract %82[0, 0, 0] : f32 from vector<1x1x1xf32>
      %cst_46 = arith.constant 8.000000e+00 : f32
      %84 = arith.divf %63, %cst_46 : f32
      %cst_47 = arith.constant 8.000000e+00 : f32
      %85 = arith.divf %68, %cst_47 : f32
      %cst_48 = arith.constant 8.000000e+00 : f32
      %86 = arith.mulf %cst_48, %84 : f32
      %87 = arith.mulf %86, %84 : f32
      %88 = arith.subf %73, %87 : f32
      %cst_49 = arith.constant 0.000000e+00 : f32
      %89 = arith.maximumf %88, %cst_49 : f32
      %cst_50 = arith.constant 8.000000e+00 : f32
      %90 = arith.mulf %cst_50, %85 : f32
      %91 = arith.mulf %90, %85 : f32
      %92 = arith.subf %78, %91 : f32
      %cst_51 = arith.constant 0.000000e+00 : f32
      %93 = arith.maximumf %92, %cst_51 : f32
      %cst_52 = arith.constant 8.000000e+00 : f32
      %94 = arith.mulf %cst_52, %84 : f32
      %95 = arith.mulf %94, %85 : f32
      %96 = arith.subf %83, %95 : f32
      %97 = math.sqrt %89 : f32
      %98 = math.sqrt %93 : f32
      %99 = arith.mulf %97, %98 : f32
      %cst_53 = arith.constant 9.99999993E-9 : f32
      %100 = arith.addf %99, %cst_53 : f32
      %101 = arith.divf %96, %100 : f32
      %cst_54 = arith.constant 8.000000e+00 : f32
      %cst_55 = arith.constant 1.000000e+00 : f32
      %102 = arith.subf %cst_54, %cst_55 : f32
      %103 = arith.divf %89, %102 : f32
      %104 = math.sqrt %103 : f32
      %cst_56 = arith.constant 8.000000e+00 : f32
      %cst_57 = arith.constant 1.000000e+00 : f32
      %105 = arith.subf %cst_56, %cst_57 : f32
      %106 = arith.divf %93, %105 : f32
      %107 = math.sqrt %106 : f32
      %cst_58 = arith.constant 2.000000e+00 : f32
      %108 = arith.mulf %cst_58, %101 : f32
      %109 = arith.mulf %108, %104 : f32
      %110 = arith.mulf %109, %107 : f32
      %111 = arith.mulf %104, %104 : f32
      %112 = arith.mulf %107, %107 : f32
      %113 = arith.addf %111, %112 : f32
      %114 = arith.subf %84, %85 : f32
      %115 = arith.mulf %114, %114 : f32
      %116 = arith.addf %113, %115 : f32
      %cst_59 = arith.constant 9.99999993E-9 : f32
      %117 = arith.addf %116, %cst_59 : f32
      %118 = arith.divf %110, %117 : f32
      %cst_60 = arith.constant 1.000000e+00 : f32
      %119 = arith.subf %cst_60, %118 : f32
      %c0_61 = arith.constant 0 : index
      %c0_62 = arith.constant 0 : index
      %120 = memref.load %arg3[%c0_61, %c0_62] : memref<1x1xf32, #tpu.memory_space<smem>>
      memref.store %119, %arg3[%c0_61, %c0_62] : memref<1x1xf32, #tpu.memory_space<smem>>
    } else {
    }
    return
  }
  func.func @transform_0(%arg0: i32) -> (i32, i32) {
    %c0_i32 = arith.constant 0 : i32
    %c0_i32_0 = arith.constant 0 : i32
    return %c0_i32, %arg0 : i32, i32
  }
  func.func @transform_1(%arg0: i32) -> (i32, i32) {
    %c0_i32 = arith.constant 0 : i32
    %c0_i32_0 = arith.constant 0 : i32
    return %c0_i32, %arg0 : i32, i32
  }
  func.func @transform_2(%arg0: i32) -> (i32, i32) {
    %c0_i32 = arith.constant 0 : i32
    %c0_i32_0 = arith.constant 0 : i32
    %c0_i32_1 = arith.constant 0 : i32
    return %c0_i32, %c0_i32_0 : i32, i32
  }
}

</mosaic_0001>

<llo_original>
// kernel: tpu_custom_call.1
$region0: #{tpu_custom_call.1}
  #allocation0 [shape = 'u32[]', space=smem, size = 0x4, offset = 0x4, fixed_abs, tag = 'smem constant byte address 0x4 - core index']
  #allocation1 [shape = 'u32[144,128]{1,0:T(1,128)}', space=vmem, size = 0x12000, scoped, tag = 'internal scratch']
  #allocation2 [shape = 'f32[1,128]{1,0:T(1,128)}', space=vmem, size = 0x200, scoped, tag = 'scratch operand']
  #allocation3 [shape = 'f32[1,128]{1,0:T(1,128)}', space=vmem, size = 0x200, scoped, tag = 'scratch operand']
  #allocation4 [shape = 'f32[1,128]{1,0:T(1,128)}', space=vmem, size = 0x200, scoped, tag = 'scratch operand']
  #allocation5 [shape = 'f32[1,128]{1,0:T(1,128)}', space=vmem, size = 0x200, scoped, tag = 'scratch operand']
  #allocation6 [shape = 'f32[1,128]{1,0:T(1,128)}', space=vmem, size = 0x200, scoped, tag = 'scratch operand']
  %s0 = inlined_call_operand.hbm [shape: f32[20,128], index: 0, kind: input, shape index: {}]
  %s1 = inlined_call_operand.vmem [shape: f32[1,128], index: 1, kind: input, shape index: {}]
  %s2 = inlined_call_operand.hbm [shape: f32[1,1], index: 2, kind: output, shape index: {}]
  %s3 = sld [smem:[#allocation0]]
  $region30: #{tpu_custom_call.1} parent=0
    _
  %s5 = ssub.s32 1, %s3
  %s6 = scalar_select 0, %s5, %s3
  $region1: #{tpu_custom_call.1} parent=0
    #allocation7 [shape = 'u8[12288]{0}', space=vmem, size = 0x3000, scoped, tag = 'input window, operand 0, single buffered']
    #allocation8 [shape = 's32[1]{0}', space=sflag, size = 0x4, scoped, tag = 'scoped memory for tpu_custom_call.1']
    #allocation9 [shape = 's32[1]{0}', space=sflag, size = 0x4, scoped, tag = 'scoped memory for tpu_custom_call.1']
    #allocation10 [shape = 'u8[512]{0}', space=smem, size = 0x200, scoped, tag = 'output window, operand 0, single buffered']
    %7 = vsyncpa [#allocation8], 0
    %8 = vsyncpa [#allocation9], 0
    // Predicated region
    $region2: #{tpu_custom_call.1} parent=1 // pred_check
      _
    $region3: #{tpu_custom_call.1} parent=1 // pred_check_branch
      %10 = sbr.rel (0) target = $region5
    $region4: #{tpu_custom_call.1} parent=1 // pred_region
      %s12 = ssub.s32 384, 384
      %13 = vsyncadd [#allocation8], %s12
      %s14 = sshll.u32 [#allocation7], 4
      %s15 = int_to_ptr.vmem [resolvable:$true] %s14
      %20 = dma.hbm_to_vmem [thread:$0]  %s0, 384, %s15, [#allocation8], 128, 128, 8
    $region5: #{tpu_custom_call.1} parent=1 // pred_fallthru
      _
    // Predicated region
    $region6: #{tpu_custom_call.1} parent=1 // pred_check
      _
    $region7: #{tpu_custom_call.1} parent=1 // pred_check_branch
      %22 = sbr.rel (0) target = $region9
    $region8: #{tpu_custom_call.1} parent=1 // pred_region
      _
    $region9: #{tpu_custom_call.1} parent=1 // pred_fallthru
      _
    // Predicated region
    $region10: #{tpu_custom_call.1} parent=1 // pred_check
      _
    $region11: #{tpu_custom_call.1} parent=1 // pred_check_branch
      %24 = sbr.rel (0) target = $region13
    $region12: #{tpu_custom_call.1} parent=1 // pred_region
      %25 = dma.done [#allocation8], 384
    $region13: #{tpu_custom_call.1} parent=1 // pred_fallthru
      _
    %p26 = scmp.eq.s32.totalorder 0, 0
    // Predicated region
    $region14: #{tpu_custom_call.1} parent=1 // pred_check
      %p27 = pneg %p26
    $region15: #{tpu_custom_call.1} parent=1 // pred_check_branch
      %29 = sbr.rel (%p27) target = $region17
    $region16: #{tpu_custom_call.1} parent=1 // pred_region
      %30 = vst [vmem:[#allocation2] sm:$0x1] 0.0
      %31 = vst [vmem:[#allocation3] sm:$0x1] 0.0
      %32 = vst [vmem:[#allocation4] sm:$0x1] 0.0
      %33 = vst [vmem:[#allocation5] sm:$0x1] 0.0
      %34 = vst [vmem:[#allocation6] sm:$0x1] 0.0
    $region17: #{tpu_custom_call.1} parent=1 // pred_fallthru
      _
    %v35 = vld [vmem:[#allocation7] sm:$0xff]
    %v36 = vld [vmem:[#allocation7 + $0x8] sm:$0xff]
    %v37 = vld [vmem:[#allocation7 + $0x10] sm:$0xf]
    %v38 = vld [vmem:[%s1] sm:$0x1]
    %v39 = vlaneseq
    %v40 = vshrl.u32 %v39, 7
    %v41 = vadd.s32 %v40, 8
    %v42 = vadd.s32 %v40, 16
    %v43 = vcvt.s32.f32 %v40
    %v44 = vcvt.s32.f32 %v41
    %v45 = vcvt.s32.f32 %v42
    %v46 = vmul.f32 %v43, 0.10526316
    %v47 = vmul.f32 %v44, 0.10526316
    %v48 = vmul.f32 %v45, 0.10526316
    %v49 = vadd.f32 %v46, -1.0
    %v50 = vadd.f32 %v47, -1.0
    %v51 = vadd.f32 %v48, -1.0
    %vm52 = vcmask 1043456
    %v53 = vsel %vm52, %v37, -inf
    %v54 = vmax.f32 %v35, %v36
    %v55 = vmax.f32 %v54, %v53
    %v56 = vrot.slane %v55, 4
    %v57 = vmax.f32 %v55, %v56
    %v58 = vrot.slane %v57, 2
    %v59 = vmax.f32 %v57, %v58
    %v60 = vrot.slane %v59, 1
    %v61 = vmax.f32 %v59, %v60
    %v62 = vsub.f32 %v35, %v61
    %v63 = vsub.f32 %v36, %v61
    %v64 = vsub.f32 %v37, %v61
    %v65 = vmul.f32 %v62, 1.442695
    %v66 = vpow.pop %v65
    %v67 = vmul.f32 %v63, 1.442695
    %v68 = vpow.pop %v67
    %v69 = vmul.f32 %v64, 1.442695
    %v70 = vpow.pop %v69
    %v71 = vmul.f32 %v66, %v49
    %v72 = vmul.f32 %v68, %v50
    %v73 = vmul.f32 %v70, %v51
    %v74 = vadd.f32 %v71, %v72
    %v75 = vsel %vm52, %v73, 0.0
    %v76 = vadd.f32 %v74, %v75
    %v77 = vrot.slane %v76, 4
    %v78 = vadd.f32 %v76, %v77
    %v79 = vrot.slane %v78, 2
    %v80 = vadd.f32 %v78, %v79
    %v81 = vrot.slane %v80, 1
    %v82 = vadd.f32 %v80, %v81
    %v83 = vadd.f32 %v66, %v68
    %v84 = vsel %vm52, %v70, 0.0
    %v85 = vadd.f32 %v83, %v84
    %v86 = vrot.slane %v85, 4
    %v87 = vadd.f32 %v85, %v86
    %v88 = vrot.slane %v87, 2
    %v89 = vadd.f32 %v87, %v88
    %v90 = vrot.slane %v89, 1
    %v91 = vadd.f32 %v89, %v90
    %v92 = vrcp.pop %v91
    %v93 = vmul.f32 %v91, %v92
    %v94 = vsub.f32 2.0, %v93
    %v95 = vmul.f32 %v92, %v94
    %v96 = vmul.f32 %v82, %v95
    %v97 = vlaneseq
    %v98 = vand.u32 %v97, 127
    %s99 = smul.u32 0, 128
    %v100 = vstv %s99
    %v101 = vadd.s32 %v98, %v100
    %vm102 = vcmp.lt.s32.totalorder %v101, 8
    %v103 = vsel %vm102, 1, 0
    %v104 = vcvt.s32.f32 %v103
    %v105 = vmul.f32 %v96, %v104
    %v106 = vmul.f32 %v38, %v104
    %v107 = vld [vmem:[#allocation2] sm:$0x1]
    %v108 = vadd.f32 %v107, %v105
    %109 = vst [vmem:[#allocation2] sm:$0x1] %v108
    %v110 = vld [vmem:[#allocation3] sm:$0x1]
    %v111 = vadd.f32 %v110, %v106
    %112 = vst [vmem:[#allocation3] sm:$0x1] %v111
    %v113 = vld [vmem:[#allocation4] sm:$0x1]
    %v114 = vmul.f32 %v105, %v105
    %v115 = vadd.f32 %v113, %v114
    %116 = vst [vmem:[#allocation4] sm:$0x1] %v115
    %v117 = vld [vmem:[#allocation5] sm:$0x1]
    %v118 = vmul.f32 %v106, %v106
    %v119 = vadd.f32 %v117, %v118
    %120 = vst [vmem:[#allocation5] sm:$0x1] %v119
    %v121 = vld [vmem:[#allocation6] sm:$0x1]
    %v122 = vmul.f32 %v105, %v106
    %v123 = vadd.f32 %v121, %v122
    %124 = vst [vmem:[#allocation6] sm:$0x1] %v123
    // Predicated region
    $region18: #{tpu_custom_call.1} parent=1 // pred_check
      %p125 = pneg %p26
    $region19: #{tpu_custom_call.1} parent=1 // pred_check_branch
      %127 = sbr.rel (%p125) target = $region21
    $region20: #{tpu_custom_call.1} parent=1 // pred_region
      %v128 = vld [vmem:[#allocation2] sm:$0x1]
      %vm129 = vcmask 1040384
      %v130 = vsel %vm129, %v128, 0.0
      %131 = vadd.xlane.f32.xlu0 %v130
      %v132 = vpop.xlane.xlu0 %131
      %v133 = vrot.slane %v132, 4
      %v134 = vadd.f32 %v132, %v133
      %v135 = vrot.slane %v134, 2
      %v136 = vadd.f32 %v134, %v135
      %v137 = vrot.slane %v136, 1
      %v138 = vadd.f32 %v136, %v137
      %s139 = vtos %v138
      %v140 = vld [vmem:[#allocation3] sm:$0x1]
      %v141 = vsel %vm129, %v140, 0.0
      %142 = vadd.xlane.f32.xlu0 %v141
      %v143 = vpop.xlane.xlu0 %142
      %v144 = vrot.slane %v143, 4
      %v145 = vadd.f32 %v143, %v144
      %v146 = vrot.slane %v145, 2
      %v147 = vadd.f32 %v145, %v146
      %v148 = vrot.slane %v147, 1
      %v149 = vadd.f32 %v147, %v148
      %s150 = vtos %v149
      %v151 = vld [vmem:[#allocation4] sm:$0x1]
      %v152 = vsel %vm129, %v151, 0.0
      %153 = vadd.xlane.f32.xlu0 %v152
      %v154 = vpop.xlane.xlu0 %153
      %v155 = vrot.slane %v154, 4
      %v156 = vadd.f32 %v154, %v155
      %v157 = vrot.slane %v156, 2
      %v158 = vadd.f32 %v156, %v157
      %v159 = vrot.slane %v158, 1
      %v160 = vadd.f32 %v158, %v159
      %s161 = vtos %v160
      %v162 = vld [vmem:[#allocation5] sm:$0x1]
      %v163 = vsel %vm129, %v162, 0.0
      %164 = vadd.xlane.f32.xlu0 %v163
      %v165 = vpop.xlane.xlu0 %164
      %v166 = vrot.slane %v165, 4
      %v167 = vadd.f32 %v165, %v166
      %v168 = vrot.slane %v167, 2
      %v169 = vadd.f32 %v167, %v168
      %v170 = vrot.slane %v169, 1
      %v171 = vadd.f32 %v169, %v170
      %s172 = vtos %v171
      %v173 = vld [vmem:[#allocation6] sm:$0x1]
      %v174 = vsel %vm129, %v173, 0.0
      %175 = vadd.xlane.f32.xlu0 %v174
      %v176 = vpop.xlane.xlu0 %175
      %v177 = vrot.slane %v176, 4
      %v178 = vadd.f32 %v176, %v177
      %v179 = vrot.slane %v178, 2
      %v180 = vadd.f32 %v178, %v179
      %v181 = vrot.slane %v180, 1
      %v182 = vadd.f32 %v180, %v181
      %s183 = vtos %v182
      %v184 = vrcp.pop 8.0
      %s185 = vtos %v184
      %s186 = smul.f32 %s139, %s185
      %v187 = vrcp.pop 8.0
      %s188 = vtos %v187
      %s189 = smul.f32 %s150, %s188
      %s190 = smul.f32 %s186, 8.0
      %s191 = smul.f32 %s190, %s186
      %s192 = ssub.f32 %s161, %s191
      %s193 = smax.f32 %s192, 0.0
      %s194 = smul.f32 %s189, 8.0
      %s195 = smul.f32 %s194, %s189
      %s196 = ssub.f32 %s172, %s195
      %s197 = smax.f32 %s196, 0.0
      %s198 = smul.f32 %s190, %s189
      %s199 = ssub.f32 %s183, %s198
      %v200 = vstv %s193
      %v201 = vrsqrt.pop %v200
      %v202 = vmul.f32 %v200, %v201
      %vm203 = vcmp.eq.f32.partialorder %v200, inf
      %v204 = vsel %vm203, %v200, %v202
      %vm205 = vcmp.eq.f32.partialorder %v200, 0.0
      %v206 = vand.u32 %v200, 2147483648
      %v207 = vsel %vm205, %v206, %v204
      %s208 = vtos %v207
      %v209 = vstv %s197
      %v210 = vrsqrt.pop %v209
      %v211 = vmul.f32 %v209, %v210
      %vm212 = vcmp.eq.f32.partialorder %v209, inf
      %v213 = vsel %vm212, %v209, %v211
      %vm214 = vcmp.eq.f32.partialorder %v209, 0.0
      %v215 = vand.u32 %v209, 2147483648
      %v216 = vsel %vm214, %v215, %v213
      %s217 = vtos %v216
      %s218 = smul.f32 %s208, %s217
      %s219 = sadd.f32 %s218, 1e-08
      %v220 = vstv %s219
      %v221 = vrcp.pop %v220
      %s222 = vtos %v221
      %s223 = smul.f32 %s199, %s222
      %v224 = vrcp.pop 7.0
      %s225 = vtos %v224
      %s226 = smul.f32 %s193, %s225
      %v227 = vstv %s226
      %v228 = vrsqrt.pop %v227
      %v229 = vmul.f32 %v227, %v228
      %vm230 = vcmp.eq.f32.partialorder %v227, inf
      %v231 = vsel %vm230, %v227, %v229
      %vm232 = vcmp.eq.f32.partialorder %v227, 0.0
      %v233 = vand.u32 %v227, 2147483648
      %v234 = vsel %vm232, %v233, %v231
      %s235 = vtos %v234
      %v236 = vrcp.pop 7.0
      %s237 = vtos %v236
      %s238 = smul.f32 %s197, %s237
      %v239 = vstv %s238
      %v240 = vrsqrt.pop %v239
      %v241 = vmul.f32 %v239, %v240
      %vm242 = vcmp.eq.f32.partialorder %v239, inf
      %v243 = vsel %vm242, %v239, %v241
      %vm244 = vcmp.eq.f32.partialorder %v239, 0.0
      %v245 = vand.u32 %v239, 2147483648
      %v246 = vsel %vm244, %v245, %v243
      %s247 = vtos %v246
      %s248 = smul.f32 %s223, 2.0
      %s249 = smul.f32 %s248, %s235
      %s250 = smul.f32 %s249, %s247
      %s251 = smul.f32 %s235, %s235
      %s252 = smul.f32 %s247, %s247
      %s253 = sadd.f32 %s251, %s252
      %s254 = ssub.f32 %s186, %s189
      %s255 = smul.f32 %s254, %s254
      %s256 = sadd.f32 %s253, %s255
      %s257 = sadd.f32 %s256, 1e-08
      %v258 = vstv %s257
      %v259 = vrcp.pop %v258
      %s260 = vtos %v259
      %s261 = smul.f32 %s250, %s260
      %s262 = ssub.f32 1.0, %s261
      %s263 = scalar_lea.smem [#allocation10], 0
      %264 = sst [smem:[%s263]] %s262
    $region21: #{tpu_custom_call.1} parent=1 // pred_fallthru
      _
    // Predicated region
    $region22: #{tpu_custom_call.1} parent=1 // pred_check
      _
    $region23: #{tpu_custom_call.1} parent=1 // pred_check_branch
      %266 = sbr.rel (0) target = $region25
    $region24: #{tpu_custom_call.1} parent=1 // pred_region
      %s268 = ssub.s32 16, 16
      %269 = vsyncadd [#allocation9], %s268
      %272 = dma.smem_to_hbm [#allocation10], 16, %s2, [#allocation9]
    $region25: #{tpu_custom_call.1} parent=1 // pred_fallthru
      _
    // Predicated region
    $region26: #{tpu_custom_call.1} parent=1 // pred_check
      _
    $region27: #{tpu_custom_call.1} parent=1 // pred_check_branch
      %274 = sbr.rel (0) target = $region29
    $region28: #{tpu_custom_call.1} parent=1 // pred_region
      %275 = dma.done [#allocation9], 16
    $region29: #{tpu_custom_call.1} parent=1 // pred_fallthru
      _
    %276 = sfence
    %277 = vsyncpa [#allocation8], 1
    %278 = vsyncpa [#allocation9], 1

</llo_original>
